<compile_context>
chip_gen: v7x
topology: tpu7x:2x2x1
jax: 0.10.0
libtpu: 0.0.40
codegen_flags: <defaults>
</compile_context>

<pallas_src>
import numpy as np
import jax
import jax.numpy as jnp
from jax.experimental import pallas as pl
from jax.experimental.pallas import tpu as pltpu


_LANE = 128
_SUBLANE = 8
# Budget used when picking the batch tile (double-buffered x/out tiles +
# resident weights).  Kept well below the v7x scoped default (32 MiB of 64 MiB
# physical), so the same configuration is safe on v5e/v6e (128 MiB) too.
_VMEM_TILE_BUDGET = 24 << 20
_VMEM_LIMIT_BYTES = 32 << 20


# ----------------------------------------------------------------------------
# Fused FNN kernel
# ----------------------------------------------------------------------------

def _fnn_kernel(x_ref, v1_ref, b1_ref, v2_ref, b2_ref, s1_ref, s2_ref, o_ref):
    # x_ref : (tile_b, d_in)        VMEM
    # v1_ref: (d_in,  d_fnn)        VMEM  (torch weight, transposed)
    # b1_ref: (1,     d_fnn)        VMEM
    # v2_ref: (d_fnn, d_out_p)      VMEM  (torch weight, transposed, lane-padded)
    # b2_ref: (1,     d_out_p)      VMEM  (lane-padded)
    # s1/s2 : (1,) f32              SMEM  (precomputed g/||V||_F weight-norm scales)
    # o_ref : (tile_b, d_out_p)     VMEM
    s1 = s1_ref[0]
    s2 = s2_ref[0]

    # weight_norm(dim=None): W = (g/||V||_F) * V.  Scaling the small input tile
    # (layer 1) / the output tile (layer 2) is algebraically identical to
    # scaling the weights, and keeps the weights untouched in VMEM.
    # NOTE: default MXU f32 matmul precision; the HIGHEST-precision reference
    # matches within rtol=5e-3 at these K sizes.
    h = jnp.dot(x_ref[...] * s1, v1_ref[...], preferred_element_type=jnp.float32)
    h = jnp.maximum(h + b1_ref[...], 0.0)          # Linear -> ReLU

    # Dropout: identity in the deterministic / eval forward.

    out = jnp.dot(h, v2_ref[...], preferred_element_type=jnp.float32)
    o_ref[...] = (out * s2 + b2_ref[...]).astype(o_ref.dtype)


# ----------------------------------------------------------------------------
# Wrapper
# ----------------------------------------------------------------------------

def _round_up(x, m):
    return ((x + m - 1) // m) * m


def _choose_tile_b(B, d_in, d_out_p, weight_bytes):
    """Largest batch tile that (a) divides B, (b) fits the VMEM budget with the
    resident weights, and (c) for B >= 16 leaves >= 2 grid steps so both v7x
    TensorCores get work under dimension_semantics=("parallel",)."""
    if B % _SUBLANE != 0:
        return B                                     # tiny/ragged batch: one tile
    per_row = (d_in + d_out_p) * 4 * 2               # double-buffered x + out rows
    cap = max((_VMEM_TILE_BUDGET - weight_bytes) // per_row, _SUBLANE)
    if B >= 2 * _SUBLANE:
        cap = min(cap, B // 2)                       # >= 2 grid steps (v7x megacore)
    for t in (4096, 2048, 1024, 512, 256, 128, 64, 32, 16, 8):
        if t <= cap and B % t == 0:
            return t
    return B


def fnn_forward(params, x, tile_b=None):
    """Fused FNN forward.  x: (B, d_sub_node) f32 -> (B, out_dim) f32."""
    x = x.astype(jnp.float32)
    B, d_in = x.shape
    d_fnn = params['v1'].shape[1]
    d_out = params['v2'].shape[1]

    # Hoisted weight-norm scales (computed once per call, outside the kernel,
    # with the same numerics as the reference's jnp.linalg.norm).
    s1 = (params['g1'].reshape(()) / jnp.linalg.norm(params['v1'])
          ).reshape(1).astype(jnp.float32)
    s2 = (params['g2'].reshape(()) / jnp.linalg.norm(params['v2'])
          ).reshape(1).astype(jnp.float32)

    # Lane-dense output: zero-pad the output feature dim to a multiple of 128 so
    # the (tile_b, d_out_p) store is unmasked; slice back afterwards.
    d_out_p = _round_up(d_out, _LANE)
    b1 = params['b1'].reshape(1, d_fnn).astype(jnp.float32)
    v2 = params['v2'].astype(jnp.float32)
    b2 = params['b2'].reshape(1, d_out).astype(jnp.float32)
    if d_out_p != d_out:
        v2 = jnp.pad(v2, ((0, 0), (0, d_out_p - d_out)))
        b2 = jnp.pad(b2, ((0, 0), (0, d_out_p - d_out)))

    # Resident (double-buffered) weight/bias bytes in VMEM.
    weight_bytes = 2 * 4 * (d_in * d_fnn + d_fnn * d_out_p + d_fnn + d_out_p)
    if tile_b is None:
        tile_b = _choose_tile_b(B, d_in, d_out_p, weight_bytes)
    assert B % tile_b == 0

    grid = (B // tile_b,)
    flops = 2 * B * d_fnn * (d_in + d_out_p)
    bytes_accessed = 4 * (B * (d_in + d_out_p) + d_in * d_fnn
                          + d_fnn * d_out_p + d_fnn + d_out_p + 2)

    out_p = pl.pallas_call(
        _fnn_kernel,
        out_shape=jax.ShapeDtypeStruct((B, d_out_p), jnp.float32),
        grid=grid,
        in_specs=[
            pl.BlockSpec((tile_b, d_in), lambda i: (i, 0)),         # x (batch-tiled)
            pl.BlockSpec((d_in, d_fnn), lambda i: (0, 0)),          # V1 (resident)
            pl.BlockSpec((1, d_fnn), lambda i: (0, 0)),             # b1
            pl.BlockSpec((d_fnn, d_out_p), lambda i: (0, 0)),       # V2 (resident, padded)
            pl.BlockSpec((1, d_out_p), lambda i: (0, 0)),           # b2
            pl.BlockSpec(memory_space=pltpu.MemorySpace.SMEM),      # scale1 (scalar)
            pl.BlockSpec(memory_space=pltpu.MemorySpace.SMEM),      # scale2 (scalar)
        ],
        out_specs=pl.BlockSpec((tile_b, d_out_p), lambda i: (i, 0)),
        compiler_params=pltpu.CompilerParams(
            dimension_semantics=("parallel",),
            vmem_limit_bytes=_VMEM_LIMIT_BYTES),
        cost_estimate=pl.CostEstimate(flops=flops, transcendentals=0,
                                      bytes_accessed=bytes_accessed),
    )(x, params['v1'].astype(jnp.float32), b1, v2, b2, s1, s2)

    return out_p[:, :d_out] if d_out_p != d_out else out_p


# ----------------------------------------------------------------------------
# Pure-JAX reference (for correctness check)
# ----------------------------------------------------------------------------

_HP = jax.lax.Precision.HIGHEST


def fnn_ref(params, x):
    w1 = params['v1'] * (params['g1'].reshape(()) / jnp.linalg.norm(params['v1']))
    w2 = params['v2'] * (params['g2'].reshape(()) / jnp.linalg.norm(params['v2']))
    h = jnp.maximum(jnp.matmul(x, w1, precision=_HP) + params['b1'].reshape(-1), 0.0)
    # Dropout: identity in eval / deterministic forward.
    return jnp.matmul(h, w2, precision=_HP) + params['b2'].reshape(-1)


# ----------------------------------------------------------------------------
# Deterministic parameter init (mirrors torch weight_norm reparameterization;
# g is perturbed away from ||V|| so the scale path is actually exercised).
# ----------------------------------------------------------------------------

def init_fnn(key, d_sub_node, d_fnn, out_dim, scale=0.1):
    ks = jax.random.split(key, 4)
    rnd = lambda k, s: jax.random.normal(k, s, jnp.float32) * scale
    v1 = rnd(ks[0], (d_sub_node, d_fnn))      # torch weight (d_fnn, d_sub_node), transposed
    v2 = rnd(ks[2], (d_fnn, out_dim))         # torch weight (out_dim, d_fnn), transposed
    return dict(
        v1=v1,
        g1=jnp.linalg.norm(v1) * jnp.float32(1.25),
        b1=rnd(ks[1], (1, d_fnn)),
        v2=v2,
        g2=jnp.linalg.norm(v2) * jnp.float32(0.8),
        b2=rnd(ks[3], (1, out_dim)),
    )


# ----------------------------------------------------------------------------
# Main
# ----------------------------------------------------------------------------

if __name__ == "__main__":
    B = 16
    d_sub_node, d_fnn, out_dim = 32, 128, 16
    dropout = 0.1  # no effect on the deterministic forward

    key = jax.random.PRNGKey(0)
    k_params, k_data = jax.random.split(key)
    params = init_fnn(k_params, d_sub_node, d_fnn, out_dim)
    x = jax.random.normal(k_data, (B, d_sub_node), jnp.float32)

    out = jax.block_until_ready(fnn_forward(params, x))
    ref = jax.block_until_ready(fnn_ref(params, x))

    np.testing.assert_allclose(np.asarray(out), np.asarray(ref),
                               rtol=5e-3, atol=1e-4)
    assert out.shape == (B, out_dim)

    print("KERNEL_OK")
</pallas_src>

<mosaic_0001>
module attributes {stable_mosaic.version = 11 : i64} {
  func.func @_fnn_kernel(%arg0: i32, %arg1: memref<8x32xf32, #tpu.memory_space<vmem>>, %arg2: memref<32x128xf32, #tpu.memory_space<vmem>>, %arg3: memref<1x128xf32, #tpu.memory_space<vmem>>, %arg4: memref<128x128xf32, #tpu.memory_space<vmem>>, %arg5: memref<1x128xf32, #tpu.memory_space<vmem>>, %arg6: memref<1xf32, #tpu.memory_space<smem>>, %arg7: memref<1xf32, #tpu.memory_space<smem>>, %arg8: memref<8x128xf32, #tpu.memory_space<vmem>>) attributes {dimension_semantics = [#tpu.dimension_semantics<parallel>], iteration_bounds = array<i64: 2>, scalar_prefetch = 0 : i64, scratch_operands = 0 : i64, tpu.core_type = #tpu.core_type<tc>, window_params = [{transform_indices = @transform_0, window_bounds = array<i64: 8, 32>}, {pipeline_mode = #tpu.pipeline_mode<synchronous>, transform_indices = @transform_1, window_bounds = array<i64: 32, 128>}, {pipeline_mode = #tpu.pipeline_mode<synchronous>, transform_indices = @transform_2, window_bounds = array<i64: 1, 128>}, {pipeline_mode = #tpu.pipeline_mode<synchronous>, transform_indices = @transform_3, window_bounds = array<i64: 128, 128>}, {pipeline_mode = #tpu.pipeline_mode<synchronous>, transform_indices = @transform_4, window_bounds = array<i64: 1, 128>}, {transform_indices = @transform_5, window_bounds = array<i64: 1>}, {transform_indices = @transform_6, window_bounds = array<i64: 1>}, {transform_indices = @transform_7, window_bounds = array<i64: 8, 128>}]} {
    %c0 = arith.constant 0 : index
    %0 = memref.load %arg6[%c0] : memref<1xf32, #tpu.memory_space<smem>>
    %c0_0 = arith.constant 0 : index
    %1 = memref.load %arg7[%c0_0] : memref<1xf32, #tpu.memory_space<smem>>
    %c0_1 = arith.constant 0 : index
    %c0_2 = arith.constant 0 : index
    %2 = vector.load %arg1[%c0_1, %c0_2] : memref<8x32xf32, #tpu.memory_space<vmem>>, vector<8x32xf32>
    %3 = vector.broadcast %0 : f32 to vector<8x32xf32>
    %4 = arith.mulf %2, %3 : vector<8x32xf32>
    %c0_3 = arith.constant 0 : index
    %c0_4 = arith.constant 0 : index
    %5 = vector.load %arg2[%c0_3, %c0_4] : memref<32x128xf32, #tpu.memory_space<vmem>>, vector<32x128xf32>
    %cst = arith.constant dense<0.000000e+00> : vector<8x128xf32>
    %6 = tpu.matmul %4, %5, %cst {dimension_numbers = #tpu.dot_dimension_numbers<[1], [0], [0], [1], [0, 0, 1, 1], [], []>} : vector<8x32xf32>, vector<32x128xf32>, vector<8x128xf32> -> vector<8x128xf32>
    %c0_5 = arith.constant 0 : index
    %c0_6 = arith.constant 0 : index
    %7 = vector.load %arg3[%c0_5, %c0_6] : memref<1x128xf32, #tpu.memory_space<vmem>>, vector<1x128xf32>
    %8 = vector.broadcast %7 : vector<1x128xf32> to vector<8x128xf32>
    %9 = arith.addf %6, %8 : vector<8x128xf32>
    %cst_7 = arith.constant 0.000000e+00 : f32
    %10 = vector.broadcast %cst_7 : f32 to vector<8x128xf32>
    %11 = arith.maximumf %9, %10 : vector<8x128xf32>
    %c0_8 = arith.constant 0 : index
    %c0_9 = arith.constant 0 : index
    %12 = vector.load %arg4[%c0_8, %c0_9] : memref<128x128xf32, #tpu.memory_space<vmem>>, vector<128x128xf32>
    %cst_10 = arith.constant dense<0.000000e+00> : vector<8x128xf32>
    %13 = tpu.matmul %11, %12, %cst_10 {dimension_numbers = #tpu.dot_dimension_numbers<[1], [0], [0], [1], [0, 0, 1, 1], [], []>} : vector<8x128xf32>, vector<128x128xf32>, vector<8x128xf32> -> vector<8x128xf32>
    %14 = vector.broadcast %1 : f32 to vector<8x128xf32>
    %15 = arith.mulf %13, %14 : vector<8x128xf32>
    %c0_11 = arith.constant 0 : index
    %c0_12 = arith.constant 0 : index
    %16 = vector.load %arg5[%c0_11, %c0_12] : memref<1x128xf32, #tpu.memory_space<vmem>>, vector<1x128xf32>
    %17 = vector.broadcast %16 : vector<1x128xf32> to vector<8x128xf32>
    %18 = arith.addf %15, %17 : vector<8x128xf32>
    %c0_13 = arith.constant 0 : index
    %c0_14 = arith.constant 0 : index
    %19 = vector.load %arg8[%c0_13, %c0_14] : memref<8x128xf32, #tpu.memory_space<vmem>>, vector<8x128xf32>
    tpu.vector_store %arg8[%c0_13, %c0_14], %18 {strides = array<i32>} : memref<8x128xf32, #tpu.memory_space<vmem>>, vector<8x128xf32>,
    return
  }
  func.func @transform_0(%arg0: i32) -> (i32, i32) {
    %c0_i32 = arith.constant 0 : i32
    %c0_i32_0 = arith.constant 0 : i32
    return %arg0, %c0_i32 : i32, i32
  }
  func.func @transform_1(%arg0: i32) -> (i32, i32) {
    %c0_i32 = arith.constant 0 : i32
    %c0_i32_0 = arith.constant 0 : i32
    %c0_i32_1 = arith.constant 0 : i32
    return %c0_i32, %c0_i32_0 : i32, i32
  }
  func.func @transform_2(%arg0: i32) -> (i32, i32) {
    %c0_i32 = arith.constant 0 : i32
    %c0_i32_0 = arith.constant 0 : i32
    %c0_i32_1 = arith.constant 0 : i32
    return %c0_i32, %c0_i32_0 : i32, i32
  }
  func.func @transform_3(%arg0: i32) -> (i32, i32) {
    %c0_i32 = arith.constant 0 : i32
    %c0_i32_0 = arith.constant 0 : i32
    %c0_i32_1 = arith.constant 0 : i32
    return %c0_i32, %c0_i32_0 : i32, i32
  }
  func.func @transform_4(%arg0: i32) -> (i32, i32) {
    %c0_i32 = arith.constant 0 : i32
    %c0_i32_0 = arith.constant 0 : i32
    %c0_i32_1 = arith.constant 0 : i32
    return %c0_i32, %c0_i32_0 : i32, i32
  }
  func.func @transform_5(%arg0: i32) -> i32 {
    %c0_i32 = arith.constant 0 : i32
    %c0_i32_0 = arith.constant 0 : i32
    return %c0_i32 : i32
  }
  func.func @transform_6(%arg0: i32) -> i32 {
    %c0_i32 = arith.constant 0 : i32
    %c0_i32_0 = arith.constant 0 : i32
    return %c0_i32 : i32
  }
  func.func @transform_7(%arg0: i32) -> (i32, i32) {
    %c0_i32 = arith.constant 0 : i32
    %c0_i32_0 = arith.constant 0 : i32
    return %arg0, %c0_i32 : i32, i32
  }
}

</mosaic_0001>

<llo_original>
// kernel: tpu_custom_call.1
$region0: #{tpu_custom_call.1}
  #allocation0 [shape = 'u32[]', space=smem, size = 0x4, offset = 0x4, fixed_abs, tag = 'smem constant byte address 0x4 - core index']
  #allocation1 [shape = 'u32[144,128]{1,0:T(1,128)}', space=vmem, size = 0x12000, scoped, tag = 'internal scratch']
  #allocation2 [shape = 'f32[1]{0:T(128)S(6)}', space=smem, size = 0x200, scoped, tag = 'scoped memory for tpu_custom_call.1']
  #allocation3 [shape = 'f32[1]{0:T(128)S(6)}', space=smem, size = 0x200, scoped, tag = 'scoped memory for tpu_custom_call.1']
  %s0 = inlined_call_operand.hbm [shape: f32[16,32], index: 0, kind: input, shape index: {}]
  %s1 = inlined_call_operand.hbm [shape: f32[32,128], index: 1, kind: input, shape index: {}]
  %s2 = inlined_call_operand.vmem [shape: f32[1,128], index: 2, kind: input, shape index: {}]
  %s3 = inlined_call_operand.hbm [shape: f32[128,128], index: 3, kind: input, shape index: {}]
  %s4 = inlined_call_operand.vmem [shape: f32[1,128], index: 4, kind: input, shape index: {}]
  %s5 = inlined_call_operand.<no memory space> [shape: f32[1], index: 5, kind: input, shape index: {}]
  %s6 = inlined_call_operand.<no memory space> [shape: f32[1], index: 6, kind: input, shape index: {}]
  %s7 = inlined_call_operand.hbm [shape: f32[16,128], index: 7, kind: output, shape index: {}]
  %s8 = sld [smem:[#allocation0]]
  $region73: #{tpu_custom_call.1} parent=0
    _
  %s10 = ssub.s32 1, %s8
  %s11 = scalar_select 0, %s10, %s8
  %12 = sst [smem:[#allocation2]] %s5
  %13 = sst [smem:[#allocation3]] %s6
  $region1: #{tpu_custom_call.1} parent=0
    #allocation4 [shape = 'u8[8192]{0}', space=vmem, size = 0x2000, scoped, tag = 'input window, operand 0']
    #allocation5 [shape = 's32[2]{0}', space=sflag, size = 0x8, scoped, tag = 'scoped memory for tpu_custom_call.1']
    #allocation6 [shape = 's32[2]{0}', space=sflag, size = 0x8, scoped, tag = 'scoped memory for tpu_custom_call.1']
    #allocation7 [shape = 'u8[16384]{0}', space=vmem, size = 0x4000, scoped, tag = 'input window, operand 1, single buffered']
    #allocation8 [shape = 's32[1]{0}', space=sflag, size = 0x4, scoped, tag = 'scoped memory for tpu_custom_call.1']
    #allocation9 [shape = 'u8[65536]{0}', space=vmem, size = 0x10000, scoped, tag = 'input window, operand 3, single buffered']
    #allocation10 [shape = 'u8[8192]{0}', space=vmem, size = 0x2000, scoped, tag = 'output window, operand 0']
    %14 = vsyncpa [#allocation5], 0
    %s15 = scalar_lea.sflag [#allocation5], 1
    %16 = vsyncpa %s15, 0
    %17 = vsyncpa [#allocation8], 0
    %18 = vsyncpa [#allocation6], 0
    %s19 = scalar_lea.sflag [#allocation6], 1
    %20 = vsyncpa %s19, 0
    loop: start=0, step=1, limit=4
    $region2: #{tpu_custom_call.1} parent=1 // loop_pre_header
      _
    $region3: #{tpu_custom_call.1} parent=1 // loop_header
      %s22 = sphi 0, %s26
      %p23 = scmp.ge.s32.totalorder %s22, 4
      %s32 = sphi 0, %s34
      %s35 = sphi 0, %s32
      %s36 = sphi 0, %s35
      %s52 = sphi 0, %s36
      %s56 = sphi 0, %s56
      %s58 = sphi 0, %s56
      %s59 = sphi 0, %s58
      %s73 = sphi 0, %s59
      %s77 = sphi 0, %s77
      %s79 = sphi 0, %s77
      %s80 = sphi 0, %s79
      %s94 = sphi 0, %s80
      %s98 = sphi 0, %s98
      %s100 = sphi 0, %s98
      %s101 = sphi 0, %s100
      %s115 = sphi 0, %s101
      %s119 = sphi 0, %s119
      %s121 = sphi 0, %s119
      %s122 = sphi 0, %s121
      %s136 = sphi 0, %s122
      %s140 = sphi 0, %s140
      %s142 = sphi 0, %s140
      %s143 = sphi 0, %s142
      %s157 = sphi 0, %s143
      %s161 = sphi 0, %s161
      %s163 = sphi 0, %s161
      %s164 = sphi 0, %s163
      %s178 = sphi 0, %s164
      %s184 = sphi 0, %s186
      %s187 = sphi 0, %s184
      %s188 = sphi 0, %s187
      %s204 = sphi 0, %s188
    $region4: #{tpu_custom_call.1} parent=1 // loop_header_branch
      %25 = sbr.rel (%p23) target = $region8
    $region5: #{tpu_custom_call.1} parent=1 // loop_body
      %s27 = ssub.s32 %s22, 1
      %s28 = ssub.s32 %s22, 2
      %s29 = sadd.s32 %s22, 1
      %s30 = ssub.s32 %s22, %s29
      %p31 = scmp.eq.s32.totalorder %s30, 0
      %s33 = sadd.s32 %s32, 1
      %s34 = scalar_select %p31, %s32, %s33
      %p37 = pneg %p31
      %p38 = scmp.eq.s32.totalorder %s22, 1
      %p39 = por %p37, %p38
      %p40 = scmp.ne.s32.totalorder %s32, %s35
      %p41 = scmp.eq.s32.totalorder %s22, 0
      %p42 = por %p40, %p41
      %p43 = scmp.ne.s32.totalorder %s32, %s35
      %p44 = scmp.eq.s32.totalorder %s27, 1
      %p45 = por %p43, %p44
      %p46 = scmp.ne.s32.totalorder %s35, %s36
      %p47 = scmp.eq.s32.totalorder %s27, 0
      %p48 = por %p46, %p47
      %p49 = scmp.ne.s32.totalorder %s35, %s36
      %p50 = scmp.eq.s32.totalorder %s28, 1
      %p51 = por %p49, %p50
      %p53 = scmp.ne.s32.totalorder %s36, %s52
      %p54 = scmp.eq.s32.totalorder %s28, 0
      %p55 = por %p53, %p54
      %s57 = sadd.s32 %s56, 1
      %p60 = scmp.eq.s32.totalorder %s22, 1
      %p61 = scmp.ne.s32.totalorder %s56, %s58
      %p62 = scmp.eq.s32.totalorder %s22, 0
      %p63 = por %p61, %p62
      %p64 = scmp.ne.s32.totalorder %s56, %s58
      %p65 = scmp.eq.s32.totalorder %s27, 1
      %p66 = por %p64, %p65
      %p67 = scmp.ne.s32.totalorder %s58, %s59
      %p68 = scmp.eq.s32.totalorder %s27, 0
      %p69 = por %p67, %p68
      %p70 = scmp.ne.s32.totalorder %s58, %s59
      %p71 = scmp.eq.s32.totalorder %s28, 1
      %p72 = por %p70, %p71
      %p74 = scmp.ne.s32.totalorder %s59, %s73
      %p75 = scmp.eq.s32.totalorder %s28, 0
      %p76 = por %p74, %p75
      %s78 = sadd.s32 %s77, 1
      %p81 = scmp.eq.s32.totalorder %s22, 1
      %p82 = scmp.ne.s32.totalorder %s77, %s79
      %p83 = scmp.eq.s32.totalorder %s22, 0
      %p84 = por %p82, %p83
      %p85 = scmp.ne.s32.totalorder %s77, %s79
      %p86 = scmp.eq.s32.totalorder %s27, 1
      %p87 = por %p85, %p86
      %p88 = scmp.ne.s32.totalorder %s79, %s80
      %p89 = scmp.eq.s32.totalorder %s27, 0
      %p90 = por %p88, %p89
      %p91 = scmp.ne.s32.totalorder %s79, %s80
      %p92 = scmp.eq.s32.totalorder %s28, 1
      %p93 = por %p91, %p92
      %p95 = scmp.ne.s32.totalorder %s80, %s94
      %p96 = scmp.eq.s32.totalorder %s28, 0
      %p97 = por %p95, %p96
      %s99 = sadd.s32 %s98, 1
      %p102 = scmp.eq.s32.totalorder %s22, 1
      %p103 = scmp.ne.s32.totalorder %s98, %s100
      %p104 = scmp.eq.s32.totalorder %s22, 0
      %p105 = por %p103, %p104
      %p106 = scmp.ne.s32.totalorder %s98, %s100
      %p107 = scmp.eq.s32.totalorder %s27, 1
      %p108 = por %p106, %p107
      %p109 = scmp.ne.s32.totalorder %s100, %s101
      %p110 = scmp.eq.s32.totalorder %s27, 0
      %p111 = por %p109, %p110
      %p112 = scmp.ne.s32.totalorder %s100, %s101
      %p113 = scmp.eq.s32.totalorder %s28, 1
      %p114 = por %p112, %p113
      %p116 = scmp.ne.s32.totalorder %s101, %s115
      %p117 = scmp.eq.s32.totalorder %s28, 0
      %p118 = por %p116, %p117
      %s120 = sadd.s32 %s119, 1
      %p123 = scmp.eq.s32.totalorder %s22, 1
      %p124 = scmp.ne.s32.totalorder %s119, %s121
      %p125 = scmp.eq.s32.totalorder %s22, 0
      %p126 = por %p124, %p125
      %p127 = scmp.ne.s32.totalorder %s119, %s121
      %p128 = scmp.eq.s32.totalorder %s27, 1
      %p129 = por %p127, %p128
      %p130 = scmp.ne.s32.totalorder %s121, %s122
      %p131 = scmp.eq.s32.totalorder %s27, 0
      %p132 = por %p130, %p131
      %p133 = scmp.ne.s32.totalorder %s121, %s122
      %p134 = scmp.eq.s32.totalorder %s28, 1
      %p135 = por %p133, %p134
      %p137 = scmp.ne.s32.totalorder %s122, %s136
      %p138 = scmp.eq.s32.totalorder %s28, 0
      %p139 = por %p137, %p138
      %s141 = sadd.s32 %s140, 1
      %p144 = scmp.eq.s32.totalorder %s22, 1
      %p145 = scmp.ne.s32.totalorder %s140, %s142
      %p146 = scmp.eq.s32.totalorder %s22, 0
      %p147 = por %p145, %p146
      %p148 = scmp.ne.s32.totalorder %s140, %s142
      %p149 = scmp.eq.s32.totalorder %s27, 1
      %p150 = por %p148, %p149
      %p151 = scmp.ne.s32.totalorder %s142, %s143
      %p152 = scmp.eq.s32.totalorder %s27, 0
      %p153 = por %p151, %p152
      %p154 = scmp.ne.s32.totalorder %s142, %s143
      %p155 = scmp.eq.s32.totalorder %s28, 1
      %p156 = por %p154, %p155
      %p158 = scmp.ne.s32.totalorder %s143, %s157
      %p159 = scmp.eq.s32.totalorder %s28, 0
      %p160 = por %p158, %p159
      %s162 = sadd.s32 %s161, 1
      %p165 = scmp.eq.s32.totalorder %s22, 1
      %p166 = scmp.ne.s32.totalorder %s161, %s163
      %p167 = scmp.eq.s32.totalorder %s22, 0
      %p168 = por %p166, %p167
      %p169 = scmp.ne.s32.totalorder %s161, %s163
      %p170 = scmp.eq.s32.totalorder %s27, 1
      %p171 = por %p169, %p170
      %p172 = scmp.ne.s32.totalorder %s163, %s164
      %p173 = scmp.eq.s32.totalorder %s27, 0
      %p174 = por %p172, %p173
      %p175 = scmp.ne.s32.totalorder %s163, %s164
      %p176 = scmp.eq.s32.totalorder %s28, 1
      %p177 = por %p175, %p176
      %p179 = scmp.ne.s32.totalorder %s164, %s178
      %p180 = scmp.eq.s32.totalorder %s28, 0
      %p181 = por %p179, %p180
      %s182 = ssub.s32 %s22, %s29
      %p183 = scmp.eq.s32.totalorder %s182, 0
      %s185 = sadd.s32 %s184, 1
      %s186 = scalar_select %p183, %s184, %s185
      %p189 = pneg %p183
      %p190 = scmp.eq.s32.totalorder %s22, 1
      %p191 = por %p189, %p190
      %p192 = scmp.ne.s32.totalorder %s184, %s187
      %p193 = scmp.eq.s32.totalorder %s22, 0
      %p194 = por %p192, %p193
      %p195 = scmp.ne.s32.totalorder %s184, %s187
      %p196 = scmp.eq.s32.totalorder %s27, 1
      %p197 = por %p195, %p196
      %p198 = scmp.ne.s32.totalorder %s187, %s188
      %p199 = scmp.eq.s32.totalorder %s27, 0
      %p200 = por %p198, %p199
      %p201 = scmp.ne.s32.totalorder %s187, %s188
      %p202 = scmp.eq.s32.totalorder %s28, 1
      %p203 = por %p201, %p202
      %p205 = scmp.ne.s32.totalorder %s188, %s204
      %p206 = scmp.eq.s32.totalorder %s28, 0
      %p207 = por %p205, %p206
      %p208 = scmp.le.s32.totalorder 1, %s22
      %p209 = scmp.lt.s32.totalorder %s22, 3
      %p210 = pnand %p208, %p209
      %p211 = pneg %p210
      // Predicated region
      $region9: #{tpu_custom_call.1} parent=5 // pred_check
        _
      $region10: #{tpu_custom_call.1} parent=5 // pred_check_branch
        %213 = sbr.rel (%p210) target = $region12
      $region11: #{tpu_custom_call.1} parent=5 // pred_region
        %s214 = ssub.s32 %s22, 1
        // Predicated region
        $region13: #{tpu_custom_call.1} parent=11 // pred_check
          %p215 = pneg %p69
        $region14: #{tpu_custom_call.1} parent=11 // pred_check_branch
          %217 = sbr.rel (%p215) target = $region16
        $region15: #{tpu_custom_call.1} parent=11 // pred_region
          %s219 = ssub.s32 512, 512
          %220 = vsyncadd [#allocation8], %s219
          %s221 = sshll.u32 [#allocation7], 4
          %s222 = int_to_ptr.vmem [resolvable:$true] %s221
          %227 = dma.hbm_to_vmem [thread:$0]  %s1, 512, %s222, [#allocation8], 128, 128, 8
        $region16: #{tpu_custom_call.1} parent=11 // pred_fallthru
          _
        // Predicated region
        $region17: #{tpu_custom_call.1} parent=11 // pred_check
          %p228 = pneg %p90
        $region18: #{tpu_custom_call.1} parent=11 // pred_check_branch
          %230 = sbr.rel (%p228) target = $region20
        $region19: #{tpu_custom_call.1} parent=11 // pred_region
          _
        $region20: #{tpu_custom_call.1} parent=11 // pred_fallthru
          _
        // Predicated region
        $region21: #{tpu_custom_call.1} parent=11 // pred_check
          %p231 = pneg %p111
        $region22: #{tpu_custom_call.1} parent=11 // pred_check_branch
          %233 = sbr.rel (%p231) target = $region24
        $region23: #{tpu_custom_call.1} parent=11 // pred_region
          %s235 = ssub.s32 2048, 2048
          %236 = vsyncadd [#allocation8], %s235
          %s237 = sshll.u32 [#allocation9], 4
          %s238 = int_to_ptr.vmem [resolvable:$true] %s237
          %243 = dma.hbm_to_vmem [thread:$0]  %s3, 2048, %s238, [#allocation8], 128, 128, 8
        $region24: #{tpu_custom_call.1} parent=11 // pred_fallthru
          _
        // Predicated region
        $region25: #{tpu_custom_call.1} parent=11 // pred_check
          %p244 = pneg %p132
        $region26: #{tpu_custom_call.1} parent=11 // pred_check_branch
          %246 = sbr.rel (%p244) target = $region28
        $region27: #{tpu_custom_call.1} parent=11 // pred_region
          _
        $region28: #{tpu_custom_call.1} parent=11 // pred_fallthru
          _
        // Predicated region
        $region29: #{tpu_custom_call.1} parent=11 // pred_check
          %p247 = pneg %p153
        $region30: #{tpu_custom_call.1} parent=11 // pred_check_branch
          %249 = sbr.rel (%p247) target = $region32
        $region31: #{tpu_custom_call.1} parent=11 // pred_region
          _
        $region32: #{tpu_custom_call.1} parent=11 // pred_fallthru
          _
        // Predicated region
        $region33: #{tpu_custom_call.1} parent=11 // pred_check
          %p250 = pneg %p174
        $region34: #{tpu_custom_call.1} parent=11 // pred_check_branch
          %252 = sbr.rel (%p250) target = $region36
        $region35: #{tpu_custom_call.1} parent=11 // pred_region
          _
        $region36: #{tpu_custom_call.1} parent=11 // pred_fallthru
          _
      $region12: #{tpu_custom_call.1} parent=5 // pred_fallthru
        _
      %p253 = scmp.lt.s32.totalorder %s22, 2
      // Predicated region
      $region37: #{tpu_custom_call.1} parent=5 // pred_check
        %p254 = pneg %p253
      $region38: #{tpu_custom_call.1} parent=5 // pred_check_branch
        %256 = sbr.rel (%p254) target = $region40
      $region39: #{tpu_custom_call.1} parent=5 // pred_region
        // Predicated region
        $region41: #{tpu_custom_call.1} parent=39 // pred_check
          %p257 = pneg %p42
        $region42: #{tpu_custom_call.1} parent=39 // pred_check_branch
          %259 = sbr.rel (%p257) target = $region44
        $region43: #{tpu_custom_call.1} parent=39 // pred_region
          %s260 = sand.u32 %s32, 1
          %s261 = scalar_lea.sflag [#allocation5], %s260
          %s262 = sand.u32 %s32, 1
          %s263 = smul.addr %s262, 8
          %s264 = scalar_lea.vmem [#allocation4], %s263
          %s266 = ssub.s32 128, 128
          %267 = vsyncadd %s261, %s266
          %s268 = smul.addr %s22, 128
          %s269 = scalar_lea.hbm %s0, %s268
          %s271 = sshll.u32 %s264, 4
          %s272 = int_to_ptr.vmem [resolvable:$true] %s271
          %274 = dma.hbm_to_vmem [thread:$0]  %s269, 128, %s272, %s261
        $region44: #{tpu_custom_call.1} parent=39 // pred_fallthru
          _
      $region40: #{tpu_custom_call.1} parent=5 // pred_fallthru
        _
      %p275 = scmp.le.s32.totalorder 1, %s22
      %p276 = scmp.lt.s32.totalorder %s22, 3
      %p277 = pnand %p275, %p276
      %p278 = pneg %p277
      // Predicated region
      $region45: #{tpu_custom_call.1} parent=5 // pred_check
        _
      $region46: #{tpu_custom_call.1} parent=5 // pred_check_branch
        %280 = sbr.rel (%p277) target = $region48
      $region47: #{tpu_custom_call.1} parent=5 // pred_region
        %s281 = ssub.s32 %s22, 1
        %s282 = sand.u32 %s35, 1
        %s283 = scalar_lea.sflag [#allocation5], %s282
        %s284 = sand.u32 %s35, 1
        %s285 = smul.addr %s284, 8
        %s286 = scalar_lea.vmem [#allocation4], %s285
        // Predicated region
        $region49: #{tpu_custom_call.1} parent=47 // pred_check
          %p287 = pneg %p48
        $region50: #{tpu_custom_call.1} parent=47 // pred_check_branch
          %289 = sbr.rel (%p287) target = $region52
        $region51: #{tpu_custom_call.1} parent=47 // pred_region
          %290 = dma.done %s283, 128
        $region52: #{tpu_custom_call.1} parent=47 // pred_fallthru
          _
        // Predicated region
        $region53: #{tpu_custom_call.1} parent=47 // pred_check
          %p291 = pneg %p69
        $region54: #{tpu_custom_call.1} parent=47 // pred_check_branch
          %293 = sbr.rel (%p291) target = $region56
        $region55: #{tpu_custom_call.1} parent=47 // pred_region
          %294 = dma.done [#allocation8], 512
        $region56: #{tpu_custom_call.1} parent=47 // pred_fallthru
          _
        // Predicated region
        $region57: #{tpu_custom_call.1} parent=47 // pred_check
          %p295 = pneg %p111
        $region58: #{tpu_custom_call.1} parent=47 // pred_check_branch
          %297 = sbr.rel (%p295) target = $region60
        $region59: #{tpu_custom_call.1} parent=47 // pred_region
          %298 = dma.done [#allocation8], 2048
        $region60: #{tpu_custom_call.1} parent=47 // pred_fallthru
          _
        %s299 = sand.u32 %s35, 1
        %s300 = scalar_lea.sflag [#allocation5], %s299
        %s301 = sand.u32 %s35, 1
        %s302 = smul.addr %s301, 8
        %s303 = scalar_lea.vmem [#allocation4], %s302
        %p304 = pneg %p48
        %p305 = pneg %p45
        %p306 = pneg %p69
        %p307 = pneg %p66
        %p308 = pneg %p90
        %p309 = pneg %p87
        %p310 = pneg %p111
        %p311 = pneg %p108
        %p312 = pneg %p132
        %p313 = pneg %p129
        %p314 = pneg %p153
        %p315 = pneg %p150
        %p316 = pneg %p174
        %p317 = pneg %p171
        %p318 = pneg %p200
        %p319 = pneg %p197
        %s320 = sand.u32 %s187, 1
        %s321 = scalar_lea.sflag [#allocation6], %s320
        %s322 = sand.u32 %s187, 1
        %s323 = smul.addr %s322, 8
        %s324 = scalar_lea.vmem [#allocation10], %s323
        %s325 = sld [smem:[#allocation2]]
        %s326 = sld [smem:[#allocation3]]
        %v327 = vld [vmem:[%s286] sm:$0xff]
        %v328 = vstv %s325
        %v329 = vmul.f32 %v327, %v328
        %v330 = vld [vmem:[#allocation7] sm:$0xff]
        %v331 = vld [vmem:[#allocation7 + $0x8] sm:$0xff]
        %v332 = vld [vmem:[#allocation7 + $0x10] sm:$0xff]
        %v333 = vld [vmem:[#allocation7 + $0x18] sm:$0xff]
        %v334 = vld [vmem:[%s2] sm:$0x1]
        %v336 = vlaneseq
        %v337 = vshrl.u32 %v336, 7
        %v338 = vsub.s32 0, %v337
        %v339 = vrot.slane %v334, %v338
        %vm341 = vcmask 261120
        %v343 = vsel %vm341, %v329, 0
        %345 = vmatprep.subr.mxu0 0.0
        %346 = vmatpush1.msra.mxu0 %v330
        %347 = vmatprep.subr.mxu0 0.0
        %348 = vmatpush1.msra.mxu0 %v331
        %349 = vmatprep.subr.mxu0 0.0
        %350 = vmatpush1.msra.mxu0 %v332
        %351 = vmatprep.subr.mxu0 0.0
        %352 = vmatpush1.msra.mxu0 %v333
        %353 = vmatprep.subr.mxu0 0.0
        %354 = vmatpush1.msra.mxu0 0.0
        %355 = vmatprep.subr.mxu0 0.0
        %356 = vmatpush1.msra.mxu0 0.0
        %357 = vmatprep.subr.mxu0 0.0
        %358 = vmatpush1.msra.mxu0 0.0
        %359 = vmatprep.subr.mxu0 0.0
        %360 = vmatpush1.msra.mxu0 0.0
        %361 = vmatprep.subr.mxu0 0.0
        %362 = vmatpush1.msra.mxu0 0.0
        %363 = vmatprep.subr.mxu0 0.0
        %364 = vmatpush1.msra.mxu0 0.0
        %365 = vmatprep.subr.mxu0 0.0
        %366 = vmatpush1.msra.mxu0 0.0
        %367 = vmatprep.subr.mxu0 0.0
        %368 = vmatpush1.msra.mxu0 0.0
        %369 = vmatprep.subr.mxu0 0.0
        %370 = vmatpush1.msra.mxu0 0.0
        %371 = vmatprep.subr.mxu0 0.0
        %372 = vmatpush1.msra.mxu0 0.0
        %373 = vmatprep.subr.mxu0 0.0
        %374 = vmatpush1.msra.mxu0 0.0
        %375 = vmatprep.subr.mxu0 0.0
        %376 = vmatpush1.msra.mxu0 0.0
        %377 = vmatprep.subr.mxu0 0.0
        %378 = vmatpush1.msra.mxu0 0.0
        %379 = vmatprep.subr.mxu0 0.0
        %380 = vmatpush1.msra.mxu0 0.0
        %381 = vmatprep.subr.mxu0 0.0
        %382 = vmatpush1.msra.mxu0 0.0
        %383 = vmatprep.subr.mxu0 0.0
        %384 = vmatpush1.msra.mxu0 0.0
        %385 = vmatprep.subr.mxu0 0.0
        %386 = vmatpush1.msra.mxu0 0.0
        %387 = vmatprep.subr.mxu0 0.0
        %388 = vmatpush1.msra.mxu0 0.0
        %389 = vmatprep.subr.mxu0 0.0
        %390 = vmatpush1.msra.mxu0 0.0
        %391 = vmatprep.subr.mxu0 0.0
        %392 = vmatpush1.msra.mxu0 0.0
        %393 = vmatprep.subr.mxu0 0.0
        %394 = vmatpush1.msra.mxu0 0.0
        %395 = vmatprep.subr.mxu0 0.0
        %396 = vmatpush1.msra.mxu0 0.0
        %397 = vmatprep.subr.mxu0 0.0
        %398 = vmatpush1.msra.mxu0 0.0
        %399 = vmatprep.subr.mxu0 0.0
        %400 = vmatpush1.msra.mxu0 0.0
        %401 = vmatprep.subr.mxu0 0.0
        %402 = vmatpush1.msra.mxu0 0.0
        %403 = vmatprep.subr.mxu0 0.0
        %404 = vmatpush1.msra.mxu0 0.0
        %405 = vmatprep.subr.mxu0 0.0
        %406 = vmatpush1.msra.mxu0 0.0
        %407 = vmatprep.subr.mxu0 0.0
        %408 = vmatpush1.msra.mxu0 0.0
        %409 = vmatprep.mubr.f32.mxu0 0.0
        %410 = vmatmul.mubr.f32.gmra.mrb[0].mxu0 %v343
        %v411 = vpop.f32.mrb[0].mxu0
        %v412 = vadd.f32 %v339, %v411
        %v413 = vpop.f32.mrb[0].mxu0
        %414 = vdwg.mxu0
        %v415 = vmax.f32 %v412, 0.0
        %v416 = vld [vmem:[#allocation9] sm:$0xff]
        %v417 = vld [vmem:[#allocation9 + $0x8] sm:$0xff]
        %v418 = vld [vmem:[#allocation9 + $0x10] sm:$0xff]
        %v419 = vld [vmem:[#allocation9 + $0x18] sm:$0xff]
        %v420 = vld [vmem:[#allocation9 + $0x20] sm:$0xff]
        %v421 = vld [vmem:[#allocation9 + $0x28] sm:$0xff]
        %v422 = vld [vmem:[#allocation9 + $0x30] sm:$0xff]
        %v423 = vld [vmem:[#allocation9 + $0x38] sm:$0xff]
        %v424 = vld [vmem:[#allocation9 + $0x40] sm:$0xff]
        %v425 = vld [vmem:[#allocation9 + $0x48] sm:$0xff]
        %v426 = vld [vmem:[#allocation9 + $0x50] sm:$0xff]
        %v427 = vld [vmem:[#allocation9 + $0x58] sm:$0xff]
        %v428 = vld [vmem:[#allocation9 + $0x60] sm:$0xff]
        %v429 = vld [vmem:[#allocation9 + $0x68] sm:$0xff]
        %v430 = vld [vmem:[#allocation9 + $0x70] sm:$0xff]
        %v431 = vld [vmem:[#allocation9 + $0x78] sm:$0xff]
        %432 = vmatprep.subr.mxu0 0.0
        %433 = vmatpush1.msra.mxu0 %v416
        %434 = vmatprep.subr.mxu0 0.0
        %435 = vmatpush1.msra.mxu0 %v417
        %436 = vmatprep.subr.mxu0 0.0
        %437 = vmatpush1.msra.mxu0 %v418
        %438 = vmatprep.subr.mxu0 0.0
        %439 = vmatpush1.msra.mxu0 %v419
        %440 = vmatprep.subr.mxu0 0.0
        %441 = vmatpush1.msra.mxu0 %v420
        %442 = vmatprep.subr.mxu0 0.0
        %443 = vmatpush1.msra.mxu0 %v421
        %444 = vmatprep.subr.mxu0 0.0
        %445 = vmatpush1.msra.mxu0 %v422
        %446 = vmatprep.subr.mxu0 0.0
        %447 = vmatpush1.msra.mxu0 %v423
        %448 = vmatprep.subr.mxu0 0.0
        %449 = vmatpush1.msra.mxu0 %v424
        %450 = vmatprep.subr.mxu0 0.0
        %451 = vmatpush1.msra.mxu0 %v425
        %452 = vmatprep.subr.mxu0 0.0
        %453 = vmatpush1.msra.mxu0 %v426
        %454 = vmatprep.subr.mxu0 0.0
        %455 = vmatpush1.msra.mxu0 %v427
        %456 = vmatprep.subr.mxu0 0.0
        %457 = vmatpush1.msra.mxu0 %v428
        %458 = vmatprep.subr.mxu0 0.0
        %459 = vmatpush1.msra.mxu0 %v429
        %460 = vmatprep.subr.mxu0 0.0
        %461 = vmatpush1.msra.mxu0 %v430
        %462 = vmatprep.subr.mxu0 0.0
        %463 = vmatpush1.msra.mxu0 %v431
        %464 = vmatprep.subr.mxu0 0.0
        %465 = vmatpush1.msra.mxu0 0.0
        %466 = vmatprep.subr.mxu0 0.0
        %467 = vmatpush1.msra.mxu0 0.0
        %468 = vmatprep.subr.mxu0 0.0
        %469 = vmatpush1.msra.mxu0 0.0
        %470 = vmatprep.subr.mxu0 0.0
        %471 = vmatpush1.msra.mxu0 0.0
        %472 = vmatprep.subr.mxu0 0.0
        %473 = vmatpush1.msra.mxu0 0.0
        %474 = vmatprep.subr.mxu0 0.0
        %475 = vmatpush1.msra.mxu0 0.0
        %476 = vmatprep.subr.mxu0 0.0
        %477 = vmatpush1.msra.mxu0 0.0
        %478 = vmatprep.subr.mxu0 0.0
        %479 = vmatpush1.msra.mxu0 0.0
        %480 = vmatprep.subr.mxu0 0.0
        %481 = vmatpush1.msra.mxu0 0.0
        %482 = vmatprep.subr.mxu0 0.0
        %483 = vmatpush1.msra.mxu0 0.0
        %484 = vmatprep.subr.mxu0 0.0
        %485 = vmatpush1.msra.mxu0 0.0
        %486 = vmatprep.subr.mxu0 0.0
        %487 = vmatpush1.msra.mxu0 0.0
        %488 = vmatprep.subr.mxu0 0.0
        %489 = vmatpush1.msra.mxu0 0.0
        %490 = vmatprep.subr.mxu0 0.0
        %491 = vmatpush1.msra.mxu0 0.0
        %492 = vmatprep.subr.mxu0 0.0
        %493 = vmatpush1.msra.mxu0 0.0
        %494 = vmatprep.subr.mxu0 0.0
        %495 = vmatpush1.msra.mxu0 0.0
        %496 = vmatprep.mubr.f32.mxu0 0.0
        %497 = vmatmul.mubr.f32.gmra.mrb[0].mxu0 %v415
        %v498 = vpop.f32.mrb[0].mxu0
        %v499 = vadd.f32 0.0, %v498
        %v500 = vpop.f32.mrb[0].mxu0
        %501 = vdwg.mxu0
        %v502 = vstv %s326
        %v503 = vmul.f32 %v499, %v502
        %v504 = vld [vmem:[%s4] sm:$0x1]
        %v506 = vlaneseq
        %v507 = vshrl.u32 %v506, 7
        %v508 = vsub.s32 0, %v507
        %v509 = vrot.slane %v504, %v508
        %v511 = vadd.f32 %v503, %v509
        %512 = vst [vmem:[%s324] sm:$0xff] %v511
        %s513 = sand.u32 %s187, 1
        %s514 = scalar_lea.sflag [#allocation6], %s513
        %s515 = sand.u32 %s187, 1
        %s516 = smul.addr %s515, 8
        %s517 = scalar_lea.vmem [#allocation10], %s516
        // Predicated region
        $region61: #{tpu_custom_call.1} parent=47 // pred_check
          %p518 = pneg %p197
        $region62: #{tpu_custom_call.1} parent=47 // pred_check_branch
          %520 = sbr.rel (%p518) target = $region64
        $region63: #{tpu_custom_call.1} parent=47 // pred_region
          %s522 = ssub.s32 128, 128
          %523 = vsyncadd %s514, %s522
          %s524 = smul.addr %s27, 128
          %s525 = scalar_lea.hbm %s7, %s524
          %s527 = sshll.u32 %s517, 4
          %s528 = int_to_ptr.vmem [resolvable:$true] %s527
          %530 = dma.vmem_to_hbm [thread:$0]  %s528, 128, %s525, %s514
        $region64: #{tpu_custom_call.1} parent=47 // pred_fallthru
          _
      $region48: #{tpu_custom_call.1} parent=5 // pred_fallthru
        _
      %p531 = scmp.le.s32.totalorder 2, %s22
      // Predicated region
      $region65: #{tpu_custom_call.1} parent=5 // pred_check
        %p532 = pneg %p531
      $region66: #{tpu_custom_call.1} parent=5 // pred_check_branch
        %534 = sbr.rel (%p532) target = $region68
      $region67: #{tpu_custom_call.1} parent=5 // pred_region
        %s535 = ssub.s32 %s22, 2
        // Predicated region
        $region69: #{tpu_custom_call.1} parent=67 // pred_check
          %p536 = pneg %p203
        $region70: #{tpu_custom_call.1} parent=67 // pred_check_branch
          %538 = sbr.rel (%p536) target = $region72
        $region71: #{tpu_custom_call.1} parent=67 // pred_region
          %s539 = sand.u32 %s188, 1
          %s540 = scalar_lea.sflag [#allocation6], %s539
          %s541 = sand.u32 %s188, 1
          %s542 = smul.addr %s541, 8
          %s543 = scalar_lea.vmem [#allocation10], %s542
          %544 = dma.done %s540, 128
        $region72: #{tpu_custom_call.1} parent=67 // pred_fallthru
          _
      $region68: #{tpu_custom_call.1} parent=5 // pred_fallthru
        _
    $region6: #{tpu_custom_call.1} parent=1 // loop_footer
      %s26 = sadd.s32 1, %s22
    $region7: #{tpu_custom_call.1} parent=1 // loop_footer_branch
      %21 = sbr.rel target = $region3
    $region8: #{tpu_custom_call.1} parent=1 // loop_exit
      _
    %545 = vsyncpa [#allocation5], 1
    %s546 = scalar_lea.sflag [#allocation5], 1
    %547 = vsyncpa %s546, 1
    %548 = vsyncpa [#allocation8], 1
    %549 = vsyncpa [#allocation6], 1
    %s550 = scalar_lea.sflag [#allocation6], 1
    %551 = vsyncpa %s550, 1

</llo_original>
